<compile_context>
chip_gen: v7x
topology: tpu7x:2x2x1
jax: 0.10.0
libtpu: 0.0.40
codegen_flags: <defaults>
</compile_context>

<pallas_src>
import functools
import math

import jax
import jax.numpy as jnp
from jax import lax
from jax.experimental import pallas as pl
from jax.experimental.pallas import tpu as pltpu

EPS = 1e-5
K = 3  # kernel_size (stride=1, padding=1 -> same spatial size, residual valid)


def _instance_norm(x):
    """x: (C, H*W) f32, channel-major -> per-channel normalization over lanes.

    Mean-centered variance (biased), matching nn.InstanceNorm2d(affine=False).
    """
    n = x.shape[1]
    mean = jnp.sum(x, axis=1, keepdims=True) * (1.0 / n)
    centered = x - mean
    var = jnp.sum(centered * centered, axis=1, keepdims=True) * (1.0 / n)
    return centered * lax.rsqrt(var + EPS)


def residual_block_kernel(slab1_ref, x_ref, w1_ref, w2_ref, o_ref, *, H, W):
    # slab1_ref : (1, 9C, H*W) f32  im2col slab of the zero-padded input (conv1)
    # x_ref     : (1, C,  H*W) f32  unpadded input, channel-major (residual)
    # w1_ref    : (C, 9C) f32      conv1 weights, [o, (dy*3+dx)*C + i]
    # w2_ref    : (9C, C) f32      conv2 tap-expanded weights, [(dy*3+dx)*C + o, i]
    # o_ref     : (1, C, H*W) f32  output, channel-major (reshapes to NCHW)
    HW = H * W
    cout = o_ref.shape[1]

    # ---- conv1: ONE MXU matmul, contraction dim 9*Cin = 36 (no bias) ----
    acc1 = jnp.dot(w1_ref[...], slab1_ref[0],
                   preferred_element_type=jnp.float32)           # (C, HW)

    # ---- InstanceNorm + ReLU (ConvBlock) ----
    out1 = jnp.maximum(_instance_norm(acc1), 0.0)                # (C, HW)

    # ---- conv2: tap-expanded matmul, then 9 lane-rolled, border-masked adds ----
    # y2[(dy*3+dx)*C + o, p] = sum_i w2[o,i,dy,dx] * out1[i, p]
    y2 = jnp.dot(w2_ref[...], out1,
                 preferred_element_type=jnp.float32)             # (9C, HW)

    pos = lax.broadcasted_iota(jnp.int32, (1, HW), 1)            # flat index p
    col = pos % W                                                # w coordinate
    # validity of the SOURCE pixel (h+dy-1, w+dx-1); these masks also cover
    # every roll-wraparound position for |shift| <= W+1.
    row_ok = [(pos >= W).astype(jnp.float32), None,
              (pos < HW - W).astype(jnp.float32)]                # dy = 0,1,2
    col_ok = [(col >= 1).astype(jnp.float32), None,
              (col < W - 1).astype(jnp.float32)]                 # dx = 0,1,2

    acc2 = None
    for dy in range(K):
        for dx in range(K):
            t = dy * K + dx
            s = (dy - 1) * W + (dx - 1)                          # flat source shift
            tap = y2[t * cout:(t + 1) * cout, :]                 # (C, HW)
            if s != 0:
                tap = pltpu.roll(tap, (-s) % HW, axis=1)         # XLU lane rotate
            mask = row_ok[dy]
            if col_ok[dx] is not None:
                mask = col_ok[dx] if mask is None else mask * col_ok[dx]
            if mask is not None:
                tap = tap * mask
            acc2 = tap if acc2 is None else acc2 + tap           # (C, HW)

    # ---- InstanceNorm + residual add (layout-aligned, full-block add) ----
    out2 = _instance_norm(acc2)
    o_ref[0] = (out2 + x_ref[0]).astype(o_ref.dtype)


def residual_block(x_nchw, w1_oihw, b1, w2_oihw, b2):
    """x_nchw: (N, C, H, W) f32 -> (N, C, H, W) f32.

    b1/b2 are accepted for API parity with the PyTorch module but unused:
    InstanceNorm2d(affine=False) removes any per-channel constant, so the
    conv biases cannot affect the output.
    """
    del b1, b2
    N, C, H, W = x_nchw.shape
    cout = w1_oihw.shape[0]
    assert cout == C, "residual add requires in_channels == out_channels"
    HW = H * W

    # Wrapper-side layout plumbing (all cheap XLA ops on tiny arrays):
    # im2col slab for conv1: slab1[n, (dy*3+dx)*C + i, h*W + w] = x_pad[n,i,h+dy,w+dx]
    xp = jnp.pad(x_nchw, ((0, 0), (0, 0), (1, 1), (1, 1)))
    taps = [xp[:, :, dy:dy + H, dx:dx + W].reshape(N, C, HW)
            for dy in range(K) for dx in range(K)]
    slab1 = jnp.concatenate(taps, axis=1)                        # (N, 9C, HW)
    x_flat = x_nchw.reshape(N, C, HW)                            # residual, channel-major

    # conv1 weights: (O, I, ky, kx) -> (O, 9I) with column (ky*3+kx)*I + i
    w1_mat = jnp.transpose(w1_oihw, (0, 2, 3, 1)).reshape(cout, K * K * C)
    # conv2 weights tap-expanded: (O, I, ky, kx) -> (9O, I), row (ky*3+kx)*O + o
    w2_exp = jnp.transpose(w2_oihw, (2, 3, 0, 1)).reshape(K * K * cout, C)

    kernel = functools.partial(residual_block_kernel, H=H, W=W)

    out_flat = pl.pallas_call(
        kernel,
        out_shape=jax.ShapeDtypeStruct((N, cout, HW), jnp.float32),
        grid=(N,),
        in_specs=[
            pl.BlockSpec((1, K * K * C, HW), lambda n: (n, 0, 0)),
            pl.BlockSpec((1, C, HW), lambda n: (n, 0, 0)),
            pl.BlockSpec((cout, K * K * C), lambda n: (0, 0)),
            pl.BlockSpec((K * K * cout, C), lambda n: (0, 0)),
        ],
        out_specs=pl.BlockSpec((1, cout, HW), lambda n: (n, 0, 0)),
        compiler_params=pltpu.CompilerParams(
            dimension_semantics=("parallel",)),
    )(slab1, x_flat, w1_mat, w2_exp)

    return out_flat.reshape(N, cout, H, W)


# ---------------- pure-JAX reference (mirrors the PyTorch module) ----------------
def _ref_instance_norm_nchw(x):
    mean = jnp.mean(x, axis=(2, 3), keepdims=True)
    var = jnp.mean((x - mean) ** 2, axis=(2, 3), keepdims=True)
    return (x - mean) * lax.rsqrt(var + EPS)


def residual_block_ref(x, w1, b1, w2, b2):
    dn = ("NCHW", "OIHW", "NCHW")
    out = lax.conv_general_dilated(x, w1, (1, 1), [(1, 1), (1, 1)],
                                   dimension_numbers=dn)
    out = out + b1[None, :, None, None]
    out = jnp.maximum(_ref_instance_norm_nchw(out), 0.0)
    out = lax.conv_general_dilated(out, w2, (1, 1), [(1, 1), (1, 1)],
                                   dimension_numbers=dn)
    out = out + b2[None, :, None, None]
    out = _ref_instance_norm_nchw(out)
    return out + x


if __name__ == "__main__":
    # small shapes consistent with the module: batch=2, channels=4, spatial=16
    N, C, H, W = 2, 4, 16, 16
    key = jax.random.PRNGKey(0)
    kx, kw1, kb1, kw2, kb2 = jax.random.split(key, 5)

    x = jax.random.normal(kx, (N, C, H, W), jnp.float32)
    # deterministic synthetic parameters (Conv2d weight is OIHW, bias (Cout,))
    fan_in = C * K * K
    bound = 1.0 / math.sqrt(fan_in)
    w1 = jax.random.uniform(kw1, (C, C, K, K), jnp.float32, -bound, bound)
    b1 = jax.random.uniform(kb1, (C,), jnp.float32, -bound, bound)
    w2 = jax.random.uniform(kw2, (C, C, K, K), jnp.float32, -bound, bound)
    b2 = jax.random.uniform(kb2, (C,), jnp.float32, -bound, bound)

    out = jax.block_until_ready(residual_block(x, w1, b1, w2, b2))

    ref = jax.block_until_ready(residual_block_ref(x, w1, b1, w2, b2))
    assert out.shape == (N, C, H, W)
    # f32 operands end-to-end (bf16 casts removed).  Tolerance tightened from
    # 2e-2 to 1e-2; headroom retained only for the MXU's default f32 matmul
    # precision.  Structural bugs would produce O(1) errors.
    max_err = float(jnp.max(jnp.abs(out - ref)))
    assert jnp.allclose(out, ref, atol=1e-2, rtol=1e-2), max_err

    print("KERNEL_OK")
</pallas_src>

<mosaic_0001>
module attributes {stable_mosaic.version = 11 : i64} {
  func.func @residual_block_kernel(%arg0: i32, %arg1: memref<1x36x256xf32, #tpu.memory_space<vmem>>, %arg2: memref<1x4x256xf32, #tpu.memory_space<vmem>>, %arg3: memref<4x36xf32, #tpu.memory_space<vmem>>, %arg4: memref<36x4xf32, #tpu.memory_space<vmem>>, %arg5: memref<1x4x256xf32, #tpu.memory_space<vmem>>) attributes {dimension_semantics = [#tpu.dimension_semantics<parallel>], iteration_bounds = array<i64: 2>, scalar_prefetch = 0 : i64, scratch_operands = 0 : i64, tpu.core_type = #tpu.core_type<tc>, window_params = [{transform_indices = @transform_0, window_bounds = array<i64: 1, 36, 256>}, {transform_indices = @transform_1, window_bounds = array<i64: 1, 4, 256>}, {pipeline_mode = #tpu.pipeline_mode<synchronous>, transform_indices = @transform_2, window_bounds = array<i64: 4, 36>}, {pipeline_mode = #tpu.pipeline_mode<synchronous>, transform_indices = @transform_3, window_bounds = array<i64: 36, 4>}, {transform_indices = @transform_4, window_bounds = array<i64: 1, 4, 256>}]} {
    %c0 = arith.constant 0 : index
    %c0_0 = arith.constant 0 : index
    %0 = vector.load %arg3[%c0, %c0_0] : memref<4x36xf32, #tpu.memory_space<vmem>>, vector<4x36xf32>
    %c0_1 = arith.constant 0 : index
    %c0_2 = arith.constant 0 : index
    %c0_3 = arith.constant 0 : index
    %1 = vector.load %arg1[%c0_1, %c0_2, %c0_3] : memref<1x36x256xf32, #tpu.memory_space<vmem>>, vector<1x36x256xf32>
    %2 = vector.shape_cast %1 : vector<1x36x256xf32> to vector<36x256xf32>
    %cst = arith.constant dense<0.000000e+00> : vector<4x256xf32>
    %3 = tpu.matmul %0, %2, %cst {dimension_numbers = #tpu.dot_dimension_numbers<[1], [0], [0], [1], [0, 0, 1, 1], [], []>} : vector<4x36xf32>, vector<36x256xf32>, vector<4x256xf32> -> vector<4x256xf32>
    %cst_4 = arith.constant dense<0.000000e+00> : vector<4xf32>
    %4 = vector.multi_reduction <add>, %3, %cst_4 [1] : vector<4x256xf32> to vector<4xf32>
    %5 = vector.shape_cast %4 : vector<4xf32> to vector<4x1xf32>
    %cst_5 = arith.constant 3.906250e-03 : f32
    %6 = vector.broadcast %cst_5 : f32 to vector<4x1xf32>
    %7 = arith.mulf %5, %6 : vector<4x1xf32>
    %8 = vector.broadcast %7 : vector<4x1xf32> to vector<4x256xf32>
    %9 = arith.subf %3, %8 : vector<4x256xf32>
    %10 = arith.mulf %9, %9 : vector<4x256xf32>
    %cst_6 = arith.constant dense<0.000000e+00> : vector<4xf32>
    %11 = vector.multi_reduction <add>, %10, %cst_6 [1] : vector<4x256xf32> to vector<4xf32>
    %12 = vector.shape_cast %11 : vector<4xf32> to vector<4x1xf32>
    %cst_7 = arith.constant 3.906250e-03 : f32
    %13 = vector.broadcast %cst_7 : f32 to vector<4x1xf32>
    %14 = arith.mulf %12, %13 : vector<4x1xf32>
    %cst_8 = arith.constant 9.99999974E-6 : f32
    %15 = vector.broadcast %cst_8 : f32 to vector<4x1xf32>
    %16 = arith.addf %14, %15 : vector<4x1xf32>
    %17 = math.rsqrt %16 : vector<4x1xf32>
    %18 = vector.broadcast %17 : vector<4x1xf32> to vector<4x256xf32>
    %19 = arith.mulf %9, %18 : vector<4x256xf32>
    %cst_9 = arith.constant 0.000000e+00 : f32
    %20 = vector.broadcast %cst_9 : f32 to vector<4x256xf32>
    %21 = arith.maximumf %19, %20 : vector<4x256xf32>
    %c0_10 = arith.constant 0 : index
    %c0_11 = arith.constant 0 : index
    %22 = vector.load %arg4[%c0_10, %c0_11] : memref<36x4xf32, #tpu.memory_space<vmem>>, vector<36x4xf32>
    %cst_12 = arith.constant dense<0.000000e+00> : vector<36x256xf32>
    %23 = tpu.matmul %22, %21, %cst_12 {dimension_numbers = #tpu.dot_dimension_numbers<[1], [0], [0], [1], [0, 0, 1, 1], [], []>} : vector<36x4xf32>, vector<4x256xf32>, vector<36x256xf32> -> vector<36x256xf32>
    %24 = tpu.iota {dimensions = array<i32: 1>} : vector<1x256xi32>
    %c16_i32 = arith.constant 16 : i32
    %c0_i32 = arith.constant 0 : i32
    %25 = arith.cmpi eq, %c16_i32, %c0_i32 : i32
    %c1_i32 = arith.constant 1 : i32
    %26 = arith.select %25, %c1_i32, %c16_i32 : i32
    %27 = vector.broadcast %26 : i32 to vector<1x256xi32>
    %28 = arith.remsi %24, %27 : vector<1x256xi32>
    %c0_i32_13 = arith.constant 0 : i32
    %29 = vector.broadcast %c0_i32_13 : i32 to vector<1x256xi32>
    %30 = arith.cmpi ne, %28, %29 : vector<1x256xi32>
    %c0_i32_14 = arith.constant 0 : i32
    %31 = vector.broadcast %c0_i32_14 : i32 to vector<1x256xi32>
    %32 = arith.cmpi slt, %28, %31 : vector<1x256xi32>
    %c0_i32_15 = arith.constant 0 : i32
    %33 = arith.cmpi slt, %26, %c0_i32_15 : i32
    %34 = vector.broadcast %33 : i1 to vector<1x256xi1>
    %35 = vector.broadcast %34 : vector<1x256xi1> to vector<1x256xi1>
    %36 = arith.xori %32, %35 : vector<1x256xi1>
    %37 = arith.andi %36, %30 : vector<1x256xi1>
    %38 = vector.broadcast %26 : i32 to vector<1x256xi32>
    %39 = arith.addi %28, %38 : vector<1x256xi32>
    %40 = arith.select %37, %39, %28 : vector<1x256xi1>, vector<1x256xi32>
    %c16_i32_16 = arith.constant 16 : i32
    %41 = vector.broadcast %c16_i32_16 : i32 to vector<1x256xi32>
    %42 = arith.cmpi sge, %24, %41 : vector<1x256xi32>
    %43 = arith.extui %42 : vector<1x256xi1> to vector<1x256xi32>
    %44 = arith.sitofp %43 : vector<1x256xi32> to vector<1x256xf32>
    %c240_i32 = arith.constant 240 : i32
    %45 = vector.broadcast %c240_i32 : i32 to vector<1x256xi32>
    %46 = arith.cmpi slt, %24, %45 : vector<1x256xi32>
    %47 = arith.extui %46 : vector<1x256xi1> to vector<1x256xi32>
    %48 = arith.sitofp %47 : vector<1x256xi32> to vector<1x256xf32>
    %c1_i32_17 = arith.constant 1 : i32
    %49 = vector.broadcast %c1_i32_17 : i32 to vector<1x256xi32>
    %50 = arith.cmpi sge, %40, %49 : vector<1x256xi32>
    %51 = arith.extui %50 : vector<1x256xi1> to vector<1x256xi32>
    %52 = arith.sitofp %51 : vector<1x256xi32> to vector<1x256xf32>
    %c15_i32 = arith.constant 15 : i32
    %53 = vector.broadcast %c15_i32 : i32 to vector<1x256xi32>
    %54 = arith.cmpi slt, %40, %53 : vector<1x256xi32>
    %55 = arith.extui %54 : vector<1x256xi1> to vector<1x256xi32>
    %56 = arith.sitofp %55 : vector<1x256xi32> to vector<1x256xf32>
    %57 = vector.extract_strided_slice %23 {offsets = [0, 0], sizes = [4, 256], strides = [1, 1]} : vector<36x256xf32> to vector<4x256xf32>
    %c17_i32 = arith.constant 17 : i32
    %58 = tpu.dynamic_rotate %57 by %c17_i32 dim 1 : vector<4x256xf32>, i32 -> vector<4x256xf32>
    %59 = arith.mulf %44, %52 : vector<1x256xf32>
    %60 = vector.broadcast %59 : vector<1x256xf32> to vector<4x256xf32>
    %61 = arith.mulf %58, %60 : vector<4x256xf32>
    %62 = vector.extract_strided_slice %23 {offsets = [4, 0], sizes = [4, 256], strides = [1, 1]} : vector<36x256xf32> to vector<4x256xf32>
    %c16_i32_18 = arith.constant 16 : i32
    %63 = tpu.dynamic_rotate %62 by %c16_i32_18 dim 1 : vector<4x256xf32>, i32 -> vector<4x256xf32>
    %64 = vector.broadcast %44 : vector<1x256xf32> to vector<4x256xf32>
    %65 = arith.mulf %63, %64 : vector<4x256xf32>
    %66 = arith.addf %61, %65 : vector<4x256xf32>
    %67 = vector.extract_strided_slice %23 {offsets = [8, 0], sizes = [4, 256], strides = [1, 1]} : vector<36x256xf32> to vector<4x256xf32>
    %c15_i32_19 = arith.constant 15 : i32
    %68 = tpu.dynamic_rotate %67 by %c15_i32_19 dim 1 : vector<4x256xf32>, i32 -> vector<4x256xf32>
    %69 = arith.mulf %44, %56 : vector<1x256xf32>
    %70 = vector.broadcast %69 : vector<1x256xf32> to vector<4x256xf32>
    %71 = arith.mulf %68, %70 : vector<4x256xf32>
    %72 = arith.addf %66, %71 : vector<4x256xf32>
    %73 = vector.extract_strided_slice %23 {offsets = [12, 0], sizes = [4, 256], strides = [1, 1]} : vector<36x256xf32> to vector<4x256xf32>
    %c1_i32_20 = arith.constant 1 : i32
    %74 = tpu.dynamic_rotate %73 by %c1_i32_20 dim 1 : vector<4x256xf32>, i32 -> vector<4x256xf32>
    %75 = vector.broadcast %52 : vector<1x256xf32> to vector<4x256xf32>
    %76 = arith.mulf %74, %75 : vector<4x256xf32>
    %77 = arith.addf %72, %76 : vector<4x256xf32>
    %78 = vector.extract_strided_slice %23 {offsets = [16, 0], sizes = [4, 256], strides = [1, 1]} : vector<36x256xf32> to vector<4x256xf32>
    %79 = arith.addf %77, %78 : vector<4x256xf32>
    %80 = vector.extract_strided_slice %23 {offsets = [20, 0], sizes = [4, 256], strides = [1, 1]} : vector<36x256xf32> to vector<4x256xf32>
    %c255_i32 = arith.constant 255 : i32
    %81 = tpu.dynamic_rotate %80 by %c255_i32 dim 1 : vector<4x256xf32>, i32 -> vector<4x256xf32>
    %82 = vector.broadcast %56 : vector<1x256xf32> to vector<4x256xf32>
    %83 = arith.mulf %81, %82 : vector<4x256xf32>
    %84 = arith.addf %79, %83 : vector<4x256xf32>
    %85 = vector.extract_strided_slice %23 {offsets = [24, 0], sizes = [4, 256], strides = [1, 1]} : vector<36x256xf32> to vector<4x256xf32>
    %c241_i32 = arith.constant 241 : i32
    %86 = tpu.dynamic_rotate %85 by %c241_i32 dim 1 : vector<4x256xf32>, i32 -> vector<4x256xf32>
    %87 = arith.mulf %48, %52 : vector<1x256xf32>
    %88 = vector.broadcast %87 : vector<1x256xf32> to vector<4x256xf32>
    %89 = arith.mulf %86, %88 : vector<4x256xf32>
    %90 = arith.addf %84, %89 : vector<4x256xf32>
    %91 = vector.extract_strided_slice %23 {offsets = [28, 0], sizes = [4, 256], strides = [1, 1]} : vector<36x256xf32> to vector<4x256xf32>
    %c240_i32_21 = arith.constant 240 : i32
    %92 = tpu.dynamic_rotate %91 by %c240_i32_21 dim 1 : vector<4x256xf32>, i32 -> vector<4x256xf32>
    %93 = vector.broadcast %48 : vector<1x256xf32> to vector<4x256xf32>
    %94 = arith.mulf %92, %93 : vector<4x256xf32>
    %95 = arith.addf %90, %94 : vector<4x256xf32>
    %96 = vector.extract_strided_slice %23 {offsets = [32, 0], sizes = [4, 256], strides = [1, 1]} : vector<36x256xf32> to vector<4x256xf32>
    %c239_i32 = arith.constant 239 : i32
    %97 = tpu.dynamic_rotate %96 by %c239_i32 dim 1 : vector<4x256xf32>, i32 -> vector<4x256xf32>
    %98 = arith.mulf %48, %56 : vector<1x256xf32>
    %99 = vector.broadcast %98 : vector<1x256xf32> to vector<4x256xf32>
    %100 = arith.mulf %97, %99 : vector<4x256xf32>
    %101 = arith.addf %95, %100 : vector<4x256xf32>
    %cst_22 = arith.constant dense<0.000000e+00> : vector<4xf32>
    %102 = vector.multi_reduction <add>, %101, %cst_22 [1] : vector<4x256xf32> to vector<4xf32>
    %103 = vector.shape_cast %102 : vector<4xf32> to vector<4x1xf32>
    %cst_23 = arith.constant 3.906250e-03 : f32
    %104 = vector.broadcast %cst_23 : f32 to vector<4x1xf32>
    %105 = arith.mulf %103, %104 : vector<4x1xf32>
    %106 = vector.broadcast %105 : vector<4x1xf32> to vector<4x256xf32>
    %107 = arith.subf %101, %106 : vector<4x256xf32>
    %108 = arith.mulf %107, %107 : vector<4x256xf32>
    %cst_24 = arith.constant dense<0.000000e+00> : vector<4xf32>
    %109 = vector.multi_reduction <add>, %108, %cst_24 [1] : vector<4x256xf32> to vector<4xf32>
    %110 = vector.shape_cast %109 : vector<4xf32> to vector<4x1xf32>
    %cst_25 = arith.constant 3.906250e-03 : f32
    %111 = vector.broadcast %cst_25 : f32 to vector<4x1xf32>
    %112 = arith.mulf %110, %111 : vector<4x1xf32>
    %cst_26 = arith.constant 9.99999974E-6 : f32
    %113 = vector.broadcast %cst_26 : f32 to vector<4x1xf32>
    %114 = arith.addf %112, %113 : vector<4x1xf32>
    %115 = math.rsqrt %114 : vector<4x1xf32>
    %116 = vector.broadcast %115 : vector<4x1xf32> to vector<4x256xf32>
    %117 = arith.mulf %107, %116 : vector<4x256xf32>
    %c0_27 = arith.constant 0 : index
    %c0_28 = arith.constant 0 : index
    %c0_29 = arith.constant 0 : index
    %118 = vector.load %arg2[%c0_27, %c0_28, %c0_29] : memref<1x4x256xf32, #tpu.memory_space<vmem>>, vector<1x4x256xf32>
    %119 = vector.shape_cast %118 : vector<1x4x256xf32> to vector<4x256xf32>
    %120 = arith.addf %117, %119 : vector<4x256xf32>
    %c0_30 = arith.constant 0 : index
    %c0_31 = arith.constant 0 : index
    %c0_32 = arith.constant 0 : index
    %121 = vector.load %arg5[%c0_30, %c0_31, %c0_32] : memref<1x4x256xf32, #tpu.memory_space<vmem>>, vector<1x4x256xf32>
    %122 = vector.shape_cast %121 : vector<1x4x256xf32> to vector<4x256xf32>
    %123 = vector.shape_cast %120 : vector<4x256xf32> to vector<1x4x256xf32>
    tpu.vector_store %arg5[%c0_30, %c0_31, %c0_32], %123 {strides = array<i32>} : memref<1x4x256xf32, #tpu.memory_space<vmem>>, vector<1x4x256xf32>,
    return
  }
  func.func @transform_0(%arg0: i32) -> (i32, i32, i32) {
    %c0_i32 = arith.constant 0 : i32
    %c0_i32_0 = arith.constant 0 : i32
    %c0_i32_1 = arith.constant 0 : i32
    return %arg0, %c0_i32, %c0_i32_0 : i32, i32, i32
  }
  func.func @transform_1(%arg0: i32) -> (i32, i32, i32) {
    %c0_i32 = arith.constant 0 : i32
    %c0_i32_0 = arith.constant 0 : i32
    %c0_i32_1 = arith.constant 0 : i32
    return %arg0, %c0_i32, %c0_i32_0 : i32, i32, i32
  }
  func.func @transform_2(%arg0: i32) -> (i32, i32) {
    %c0_i32 = arith.constant 0 : i32
    %c0_i32_0 = arith.constant 0 : i32
    %c0_i32_1 = arith.constant 0 : i32
    return %c0_i32, %c0_i32_0 : i32, i32
  }
  func.func @transform_3(%arg0: i32) -> (i32, i32) {
    %c0_i32 = arith.constant 0 : i32
    %c0_i32_0 = arith.constant 0 : i32
    %c0_i32_1 = arith.constant 0 : i32
    return %c0_i32, %c0_i32_0 : i32, i32
  }
  func.func @transform_4(%arg0: i32) -> (i32, i32, i32) {
    %c0_i32 = arith.constant 0 : i32
    %c0_i32_0 = arith.constant 0 : i32
    %c0_i32_1 = arith.constant 0 : i32
    return %arg0, %c0_i32, %c0_i32_0 : i32, i32, i32
  }
}

</mosaic_0001>

<llo_original>
// kernel: tpu_custom_call.1
$region0: #{tpu_custom_call.1}
  #allocation0 [shape = 'u32[]', space=smem, size = 0x4, offset = 0x4, fixed_abs, tag = 'smem constant byte address 0x4 - core index']
  #allocation1 [shape = 'u32[144,128]{1,0:T(1,128)}', space=vmem, size = 0x12000, scoped, tag = 'internal scratch']
  %s0 = inlined_call_operand.vmem [shape: f32[2,36,256], index: 0, kind: input, shape index: {}]
  %s1 = inlined_call_operand.vmem [shape: f32[2,4,256], index: 1, kind: input, shape index: {}]
  %s2 = inlined_call_operand.vmem [shape: f32[4,36], index: 2, kind: input, shape index: {}]
  %s3 = inlined_call_operand.vmem [shape: f32[36,4], index: 3, kind: input, shape index: {}]
  %s4 = inlined_call_operand.hbm [shape: f32[2,4,256], index: 4, kind: output, shape index: {}]
  %s5 = sld [smem:[#allocation0]]
  $region49: #{tpu_custom_call.1} parent=0
    _
  %s7 = ssub.s32 1, %s5
  %s8 = scalar_select 0, %s7, %s5
  $region1: #{tpu_custom_call.1} parent=0
    #allocation2 [shape = 'u8[8192]{0}', space=vmem, size = 0x2000, scoped, tag = 'output window, operand 0']
    #allocation3 [shape = 's32[2]{0}', space=sflag, size = 0x8, scoped, tag = 'scoped memory for tpu_custom_call.1']
    %9 = vsyncpa [#allocation3], 0
    %s10 = scalar_lea.sflag [#allocation3], 1
    %11 = vsyncpa %s10, 0
    loop: start=0, step=1, limit=4
    $region2: #{tpu_custom_call.1} parent=1 // loop_pre_header
      _
    $region3: #{tpu_custom_call.1} parent=1 // loop_header
      %s13 = sphi 0, %s17
      %p14 = scmp.ge.s32.totalorder %s13, 4
      %s23 = sphi 0, %s25
      %s26 = sphi 0, %s23
      %s27 = sphi 0, %s26
      %s43 = sphi 0, %s27
      %s49 = sphi 0, %s51
      %s52 = sphi 0, %s49
      %s53 = sphi 0, %s52
      %s69 = sphi 0, %s53
      %s73 = sphi 0, %s73
      %s75 = sphi 0, %s73
      %s76 = sphi 0, %s75
      %s90 = sphi 0, %s76
      %s94 = sphi 0, %s94
      %s96 = sphi 0, %s94
      %s97 = sphi 0, %s96
      %s111 = sphi 0, %s97
      %s117 = sphi 0, %s119
      %s120 = sphi 0, %s117
      %s121 = sphi 0, %s120
      %s137 = sphi 0, %s121
    $region4: #{tpu_custom_call.1} parent=1 // loop_header_branch
      %16 = sbr.rel (%p14) target = $region8
    $region5: #{tpu_custom_call.1} parent=1 // loop_body
      %s18 = ssub.s32 %s13, 1
      %s19 = ssub.s32 %s13, 2
      %s20 = sadd.s32 %s13, 1
      %s21 = ssub.s32 %s13, %s20
      %p22 = scmp.eq.s32.totalorder %s21, 0
      %s24 = sadd.s32 %s23, 1
      %s25 = scalar_select %p22, %s23, %s24
      %p28 = pneg %p22
      %p29 = scmp.eq.s32.totalorder %s13, 1
      %p30 = por %p28, %p29
      %p31 = scmp.ne.s32.totalorder %s23, %s26
      %p32 = scmp.eq.s32.totalorder %s13, 0
      %p33 = por %p31, %p32
      %p34 = scmp.ne.s32.totalorder %s23, %s26
      %p35 = scmp.eq.s32.totalorder %s18, 1
      %p36 = por %p34, %p35
      %p37 = scmp.ne.s32.totalorder %s26, %s27
      %p38 = scmp.eq.s32.totalorder %s18, 0
      %p39 = por %p37, %p38
      %p40 = scmp.ne.s32.totalorder %s26, %s27
      %p41 = scmp.eq.s32.totalorder %s19, 1
      %p42 = por %p40, %p41
      %p44 = scmp.ne.s32.totalorder %s27, %s43
      %p45 = scmp.eq.s32.totalorder %s19, 0
      %p46 = por %p44, %p45
      %s47 = ssub.s32 %s13, %s20
      %p48 = scmp.eq.s32.totalorder %s47, 0
      %s50 = sadd.s32 %s49, 1
      %s51 = scalar_select %p48, %s49, %s50
      %p54 = pneg %p48
      %p55 = scmp.eq.s32.totalorder %s13, 1
      %p56 = por %p54, %p55
      %p57 = scmp.ne.s32.totalorder %s49, %s52
      %p58 = scmp.eq.s32.totalorder %s13, 0
      %p59 = por %p57, %p58
      %p60 = scmp.ne.s32.totalorder %s49, %s52
      %p61 = scmp.eq.s32.totalorder %s18, 1
      %p62 = por %p60, %p61
      %p63 = scmp.ne.s32.totalorder %s52, %s53
      %p64 = scmp.eq.s32.totalorder %s18, 0
      %p65 = por %p63, %p64
      %p66 = scmp.ne.s32.totalorder %s52, %s53
      %p67 = scmp.eq.s32.totalorder %s19, 1
      %p68 = por %p66, %p67
      %p70 = scmp.ne.s32.totalorder %s53, %s69
      %p71 = scmp.eq.s32.totalorder %s19, 0
      %p72 = por %p70, %p71
      %s74 = sadd.s32 %s73, 1
      %p77 = scmp.eq.s32.totalorder %s13, 1
      %p78 = scmp.ne.s32.totalorder %s73, %s75
      %p79 = scmp.eq.s32.totalorder %s13, 0
      %p80 = por %p78, %p79
      %p81 = scmp.ne.s32.totalorder %s73, %s75
      %p82 = scmp.eq.s32.totalorder %s18, 1
      %p83 = por %p81, %p82
      %p84 = scmp.ne.s32.totalorder %s75, %s76
      %p85 = scmp.eq.s32.totalorder %s18, 0
      %p86 = por %p84, %p85
      %p87 = scmp.ne.s32.totalorder %s75, %s76
      %p88 = scmp.eq.s32.totalorder %s19, 1
      %p89 = por %p87, %p88
      %p91 = scmp.ne.s32.totalorder %s76, %s90
      %p92 = scmp.eq.s32.totalorder %s19, 0
      %p93 = por %p91, %p92
      %s95 = sadd.s32 %s94, 1
      %p98 = scmp.eq.s32.totalorder %s13, 1
      %p99 = scmp.ne.s32.totalorder %s94, %s96
      %p100 = scmp.eq.s32.totalorder %s13, 0
      %p101 = por %p99, %p100
      %p102 = scmp.ne.s32.totalorder %s94, %s96
      %p103 = scmp.eq.s32.totalorder %s18, 1
      %p104 = por %p102, %p103
      %p105 = scmp.ne.s32.totalorder %s96, %s97
      %p106 = scmp.eq.s32.totalorder %s18, 0
      %p107 = por %p105, %p106
      %p108 = scmp.ne.s32.totalorder %s96, %s97
      %p109 = scmp.eq.s32.totalorder %s19, 1
      %p110 = por %p108, %p109
      %p112 = scmp.ne.s32.totalorder %s97, %s111
      %p113 = scmp.eq.s32.totalorder %s19, 0
      %p114 = por %p112, %p113
      %s115 = ssub.s32 %s13, %s20
      %p116 = scmp.eq.s32.totalorder %s115, 0
      %s118 = sadd.s32 %s117, 1
      %s119 = scalar_select %p116, %s117, %s118
      %p122 = pneg %p116
      %p123 = scmp.eq.s32.totalorder %s13, 1
      %p124 = por %p122, %p123
      %p125 = scmp.ne.s32.totalorder %s117, %s120
      %p126 = scmp.eq.s32.totalorder %s13, 0
      %p127 = por %p125, %p126
      %p128 = scmp.ne.s32.totalorder %s117, %s120
      %p129 = scmp.eq.s32.totalorder %s18, 1
      %p130 = por %p128, %p129
      %p131 = scmp.ne.s32.totalorder %s120, %s121
      %p132 = scmp.eq.s32.totalorder %s18, 0
      %p133 = por %p131, %p132
      %p134 = scmp.ne.s32.totalorder %s120, %s121
      %p135 = scmp.eq.s32.totalorder %s19, 1
      %p136 = por %p134, %p135
      %p138 = scmp.ne.s32.totalorder %s121, %s137
      %p139 = scmp.eq.s32.totalorder %s19, 0
      %p140 = por %p138, %p139
      %p141 = scmp.le.s32.totalorder 1, %s13
      %p142 = scmp.lt.s32.totalorder %s13, 3
      %p143 = pnand %p141, %p142
      %p144 = pneg %p143
      // Predicated region
      $region9: #{tpu_custom_call.1} parent=5 // pred_check
        _
      $region10: #{tpu_custom_call.1} parent=5 // pred_check_branch
        %146 = sbr.rel (%p143) target = $region12
      $region11: #{tpu_custom_call.1} parent=5 // pred_region
        %s147 = ssub.s32 %s13, 1
        // Predicated region
        $region13: #{tpu_custom_call.1} parent=11 // pred_check
          %p148 = pneg %p86
        $region14: #{tpu_custom_call.1} parent=11 // pred_check_branch
          %150 = sbr.rel (%p148) target = $region16
        $region15: #{tpu_custom_call.1} parent=11 // pred_region
          _
        $region16: #{tpu_custom_call.1} parent=11 // pred_fallthru
          _
        // Predicated region
        $region17: #{tpu_custom_call.1} parent=11 // pred_check
          %p151 = pneg %p107
        $region18: #{tpu_custom_call.1} parent=11 // pred_check_branch
          %153 = sbr.rel (%p151) target = $region20
        $region19: #{tpu_custom_call.1} parent=11 // pred_region
          _
        $region20: #{tpu_custom_call.1} parent=11 // pred_fallthru
          _
      $region12: #{tpu_custom_call.1} parent=5 // pred_fallthru
        _
      %p154 = scmp.lt.s32.totalorder %s13, 2
      // Predicated region
      $region21: #{tpu_custom_call.1} parent=5 // pred_check
        %p155 = pneg %p154
      $region22: #{tpu_custom_call.1} parent=5 // pred_check_branch
        %157 = sbr.rel (%p155) target = $region24
      $region23: #{tpu_custom_call.1} parent=5 // pred_region
        // Predicated region
        $region25: #{tpu_custom_call.1} parent=23 // pred_check
          %p158 = pneg %p33
        $region26: #{tpu_custom_call.1} parent=23 // pred_check_branch
          %160 = sbr.rel (%p158) target = $region28
        $region27: #{tpu_custom_call.1} parent=23 // pred_region
          %p161 = scmp.lt.s32.totalorder %s13, 1
          %s162 = scalar_select %p161, %s13, 1
          %s163 = smul.addr %s162, 10
          %s164 = smul.addr %s163, 8
          %s165 = scalar_lea.vmem %s0, %s164
        $region28: #{tpu_custom_call.1} parent=23 // pred_fallthru
          _
        // Predicated region
        $region29: #{tpu_custom_call.1} parent=23 // pred_check
          %p166 = pneg %p59
        $region30: #{tpu_custom_call.1} parent=23 // pred_check_branch
          %168 = sbr.rel (%p166) target = $region32
        $region31: #{tpu_custom_call.1} parent=23 // pred_region
          %p169 = scmp.lt.s32.totalorder %s13, 1
          %s170 = scalar_select %p169, %s13, 1
          %s171 = smul.addr %s170, 2
          %s172 = smul.addr %s171, 4
          %s173 = scalar_lea.vmem %s1, %s172
        $region32: #{tpu_custom_call.1} parent=23 // pred_fallthru
          _
      $region24: #{tpu_custom_call.1} parent=5 // pred_fallthru
        _
      %p174 = scmp.le.s32.totalorder 1, %s13
      %p175 = scmp.lt.s32.totalorder %s13, 3
      %p176 = pnand %p174, %p175
      %p177 = pneg %p176
      // Predicated region
      $region33: #{tpu_custom_call.1} parent=5 // pred_check
        _
      $region34: #{tpu_custom_call.1} parent=5 // pred_check_branch
        %179 = sbr.rel (%p176) target = $region36
      $region35: #{tpu_custom_call.1} parent=5 // pred_region
        %s180 = ssub.s32 %s13, 1
        %p181 = scmp.lt.s32.totalorder %s18, 1
        %s182 = scalar_select %p181, %s18, 1
        %s183 = smul.addr %s182, 10
        %s184 = smul.addr %s183, 8
        %s185 = scalar_lea.vmem %s0, %s184
        %p186 = pneg %p39
        %p187 = pneg %p36
        %p188 = scmp.lt.s32.totalorder %s18, 1
        %s189 = scalar_select %p188, %s18, 1
        %s190 = smul.addr %s189, 2
        %s191 = smul.addr %s190, 4
        %s192 = scalar_lea.vmem %s1, %s191
        %p193 = pneg %p65
        %p194 = pneg %p62
        %p195 = pneg %p86
        %p196 = pneg %p83
        %p197 = pneg %p107
        %p198 = pneg %p104
        %p199 = pneg %p133
        %p200 = pneg %p130
        %s201 = sand.u32 %s120, 1
        %s202 = scalar_lea.sflag [#allocation3], %s201
        %s203 = sand.u32 %s120, 1
        %s204 = smul.addr %s203, 8
        %s205 = scalar_lea.vmem [#allocation2], %s204
        %p206 = scmp.lt.s32.totalorder %s18, 1
        %s207 = scalar_select %p206, %s18, 1
        %s208 = smul.addr %s207, 10
        %s209 = smul.addr %s208, 8
        %s210 = scalar_lea.vmem %s0, %s209
        %p211 = scmp.lt.s32.totalorder %s18, 1
        %s212 = scalar_select %p211, %s18, 1
        %s213 = smul.addr %s212, 2
        %s214 = smul.addr %s213, 4
        %s215 = scalar_lea.vmem %s1, %s214
        %v216 = vld [vmem:[%s2] sm:$0xf]
        %v217 = vld [vmem:[%s210] sm:$0xff]
        %v218 = vld [vmem:[%s210 + $0x8] sm:$0xff]
        %v219 = vld [vmem:[%s210 + $0x10] sm:$0xff]
        %v220 = vld [vmem:[%s210 + $0x18] sm:$0xff]
        %v221 = vld [vmem:[%s210 + $0x20] sm:$0xff]
        %v222 = vld [vmem:[%s210 + $0x28] sm:$0xff]
        %v223 = vld [vmem:[%s210 + $0x30] sm:$0xff]
        %v224 = vld [vmem:[%s210 + $0x38] sm:$0xff]
        %v225 = vld [vmem:[%s210 + $0x40] sm:$0xf]
        %v226 = vld [vmem:[%s210 + $0x48] sm:$0xf]
        %vm227 = vcmask 293888
        %v229 = vsel %vm227, %v216, 0
        %vm231 = vcmask 1043456
        %v233 = vsel %vm231, %v225, 0
        %v236 = vsel %vm231, %v226, 0
        %238 = vmatprep.subr.mxu0 %v218
        %239 = vmatpush1.msra.mxu0 %v217
        %240 = vmatprep.subr.mxu0 %v220
        %241 = vmatpush1.msra.mxu0 %v219
        %242 = vmatprep.subr.mxu0 %v222
        %243 = vmatpush1.msra.mxu0 %v221
        %244 = vmatprep.subr.mxu0 %v224
        %245 = vmatpush1.msra.mxu0 %v223
        %246 = vmatprep.subr.mxu0 %v236
        %247 = vmatpush1.msra.mxu0 %v233
        %248 = vmatprep.subr.mxu0 0.0
        %249 = vmatpush1.msra.mxu0 0.0
        %250 = vmatprep.subr.mxu0 0.0
        %251 = vmatpush1.msra.mxu0 0.0
        %252 = vmatprep.subr.mxu0 0.0
        %253 = vmatpush1.msra.mxu0 0.0
        %254 = vmatprep.subr.mxu0 0.0
        %255 = vmatpush1.msra.mxu0 0.0
        %256 = vmatprep.subr.mxu0 0.0
        %257 = vmatpush1.msra.mxu0 0.0
        %258 = vmatprep.subr.mxu0 0.0
        %259 = vmatpush1.msra.mxu0 0.0
        %260 = vmatprep.subr.mxu0 0.0
        %261 = vmatpush1.msra.mxu0 0.0
        %262 = vmatprep.subr.mxu0 0.0
        %263 = vmatpush1.msra.mxu0 0.0
        %264 = vmatprep.subr.mxu0 0.0
        %265 = vmatpush1.msra.mxu0 0.0
        %266 = vmatprep.subr.mxu0 0.0
        %267 = vmatpush1.msra.mxu0 0.0
        %268 = vmatprep.subr.mxu0 0.0
        %269 = vmatpush1.msra.mxu0 0.0
        %270 = vmatprep.subr.mxu0 0.0
        %271 = vmatpush1.msra.mxu0 0.0
        %272 = vmatprep.subr.mxu0 0.0
        %273 = vmatpush1.msra.mxu0 0.0
        %274 = vmatprep.subr.mxu0 0.0
        %275 = vmatpush1.msra.mxu0 0.0
        %276 = vmatprep.subr.mxu0 0.0
        %277 = vmatpush1.msra.mxu0 0.0
        %278 = vmatprep.subr.mxu0 0.0
        %279 = vmatpush1.msra.mxu0 0.0
        %280 = vmatprep.subr.mxu0 0.0
        %281 = vmatpush1.msra.mxu0 0.0
        %282 = vmatprep.subr.mxu0 0.0
        %283 = vmatpush1.msra.mxu0 0.0
        %284 = vmatprep.subr.mxu0 0.0
        %285 = vmatpush1.msra.mxu0 0.0
        %286 = vmatprep.subr.mxu0 0.0
        %287 = vmatpush1.msra.mxu0 0.0
        %288 = vmatprep.subr.mxu0 0.0
        %289 = vmatpush1.msra.mxu0 0.0
        %290 = vmatprep.subr.mxu0 0.0
        %291 = vmatpush1.msra.mxu0 0.0
        %292 = vmatprep.subr.mxu0 0.0
        %293 = vmatpush1.msra.mxu0 0.0
        %294 = vmatprep.subr.mxu0 0.0
        %295 = vmatpush1.msra.mxu0 0.0
        %296 = vmatprep.subr.mxu0 0.0
        %297 = vmatpush1.msra.mxu0 0.0
        %298 = vmatprep.subr.mxu0 0.0
        %299 = vmatpush1.msra.mxu0 0.0
        %300 = vmatprep.subr.mxu0 0.0
        %301 = vmatpush1.msra.mxu0 0.0
        %302 = vmatprep.mubr.f32.mxu0 0.0
        %303 = vmatmul.mubr.f32.gmra.mrb[0].mxu0 %v229
        %v304 = vpop.f32.mrb[0].mxu0
        %v305 = vadd.f32 0.0, %v304
        %v306 = vpop.f32.mrb[0].mxu0
        %v307 = vadd.f32 0.0, %v306
        %308 = vdwg.mxu0
        %v309 = vsel %vm231, %v305, 0.0
        %v310 = vsel %vm231, %v307, 0.0
        %v311 = vadd.f32 %v309, %v310
        %312 = vadd.xlane.f32.xlu0 %v311
        %v313 = vpop.xlane.xlu0 %312
        %v314 = vmul.f32 %v313, 0.00390625
        %v315 = vsub.f32 %v305, %v314
        %v316 = vsub.f32 %v307, %v314
        %v317 = vmul.f32 %v315, %v315
        %v318 = vmul.f32 %v316, %v316
        %v319 = vsel %vm231, %v317, 0.0
        %v320 = vsel %vm231, %v318, 0.0
        %v321 = vadd.f32 %v319, %v320
        %322 = vadd.xlane.f32.xlu0 %v321
        %v323 = vpop.xlane.xlu0 %322
        %v324 = vmul.f32 %v323, 0.00390625
        %v325 = vadd.f32 %v324, 1e-05
        %v326 = vrsqrt.pop %v325
        %v327 = vmul.f32 %v315, %v326
        %v328 = vmul.f32 %v316, %v326
        %v329 = vmax.f32 %v327, 0.0
        %v330 = vmax.f32 %v328, 0.0
        %v331 = vld [vmem:[%s3] sm:$0xff]
        %v332 = vld [vmem:[%s3 + $0x8] sm:$0xff]
        %v333 = vld [vmem:[%s3 + $0x10] sm:$0xff]
        %v334 = vld [vmem:[%s3 + $0x18] sm:$0xff]
        %v335 = vld [vmem:[%s3 + $0x20] sm:$0xf]
        %vm336 = vcmask 31744
        %v338 = vsel %vm336, %v331, 0
        %v341 = vsel %vm336, %v332, 0
        %v344 = vsel %vm336, %v333, 0
        %v347 = vsel %vm336, %v334, 0
        %v350 = vsel %vm336, %v335, 0
        %v353 = vsel %vm231, %v329, 0
        %v356 = vsel %vm231, %v330, 0
        %358 = vmatprep.subr.mxu0 %v356
        %359 = vmatpush1.msra.mxu0 %v353
        %360 = vmatprep.subr.mxu0 0.0
        %361 = vmatpush1.msra.mxu0 0.0
        %362 = vmatprep.subr.mxu0 0.0
        %363 = vmatpush1.msra.mxu0 0.0
        %364 = vmatprep.subr.mxu0 0.0
        %365 = vmatpush1.msra.mxu0 0.0
        %366 = vmatprep.subr.mxu0 0.0
        %367 = vmatpush1.msra.mxu0 0.0
        %368 = vmatprep.subr.mxu0 0.0
        %369 = vmatpush1.msra.mxu0 0.0
        %370 = vmatprep.subr.mxu0 0.0
        %371 = vmatpush1.msra.mxu0 0.0
        %372 = vmatprep.subr.mxu0 0.0
        %373 = vmatpush1.msra.mxu0 0.0
        %374 = vmatprep.subr.mxu0 0.0
        %375 = vmatpush1.msra.mxu0 0.0
        %376 = vmatprep.subr.mxu0 0.0
        %377 = vmatpush1.msra.mxu0 0.0
        %378 = vmatprep.subr.mxu0 0.0
        %379 = vmatpush1.msra.mxu0 0.0
        %380 = vmatprep.subr.mxu0 0.0
        %381 = vmatpush1.msra.mxu0 0.0
        %382 = vmatprep.subr.mxu0 0.0
        %383 = vmatpush1.msra.mxu0 0.0
        %384 = vmatprep.subr.mxu0 0.0
        %385 = vmatpush1.msra.mxu0 0.0
        %386 = vmatprep.subr.mxu0 0.0
        %387 = vmatpush1.msra.mxu0 0.0
        %388 = vmatprep.subr.mxu0 0.0
        %389 = vmatpush1.msra.mxu0 0.0
        %390 = vmatprep.subr.mxu0 0.0
        %391 = vmatpush1.msra.mxu0 0.0
        %392 = vmatprep.subr.mxu0 0.0
        %393 = vmatpush1.msra.mxu0 0.0
        %394 = vmatprep.subr.mxu0 0.0
        %395 = vmatpush1.msra.mxu0 0.0
        %396 = vmatprep.subr.mxu0 0.0
        %397 = vmatpush1.msra.mxu0 0.0
        %398 = vmatprep.subr.mxu0 0.0
        %399 = vmatpush1.msra.mxu0 0.0
        %400 = vmatprep.subr.mxu0 0.0
        %401 = vmatpush1.msra.mxu0 0.0
        %402 = vmatprep.subr.mxu0 0.0
        %403 = vmatpush1.msra.mxu0 0.0
        %404 = vmatprep.subr.mxu0 0.0
        %405 = vmatpush1.msra.mxu0 0.0
        %406 = vmatprep.subr.mxu0 0.0
        %407 = vmatpush1.msra.mxu0 0.0
        %408 = vmatprep.subr.mxu0 0.0
        %409 = vmatpush1.msra.mxu0 0.0
        %410 = vmatprep.subr.mxu0 0.0
        %411 = vmatpush1.msra.mxu0 0.0
        %412 = vmatprep.subr.mxu0 0.0
        %413 = vmatpush1.msra.mxu0 0.0
        %414 = vmatprep.subr.mxu0 0.0
        %415 = vmatpush1.msra.mxu0 0.0
        %416 = vmatprep.subr.mxu0 0.0
        %417 = vmatpush1.msra.mxu0 0.0
        %418 = vmatprep.subr.mxu0 0.0
        %419 = vmatpush1.msra.mxu0 0.0
        %420 = vmatprep.subr.mxu0 0.0
        %421 = vmatpush1.msra.mxu0 0.0
        %422 = vmatprep.mubr.f32.mxu0 0.0
        %423 = vmatmul.mubr.f32.gmra.mrb[0].mxu0 %v338
        %v424 = vpop.f32.mrb[0].mxu0
        %v425 = vadd.f32 0.0, %v424
        %v426 = vpop.f32.mrb[0].mxu0
        %v427 = vadd.f32 0.0, %v426
        %428 = vmatprep.mubr.f32.mxu0 0.0
        %429 = vmatmul.mubr.f32.gmra.mrb[0].mxu0 %v341
        %v430 = vpop.f32.mrb[0].mxu0
        %v431 = vadd.f32 0.0, %v430
        %v432 = vpop.f32.mrb[0].mxu0
        %v433 = vadd.f32 0.0, %v432
        %434 = vmatprep.mubr.f32.mxu0 0.0
        %435 = vmatmul.mubr.f32.gmra.mrb[0].mxu0 %v344
        %v436 = vpop.f32.mrb[0].mxu0
        %v437 = vadd.f32 0.0, %v436
        %v438 = vpop.f32.mrb[0].mxu0
        %v439 = vadd.f32 0.0, %v438
        %440 = vmatprep.mubr.f32.mxu0 0.0
        %441 = vmatmul.mubr.f32.gmra.mrb[0].mxu0 %v347
        %v442 = vpop.f32.mrb[0].mxu0
        %v443 = vadd.f32 0.0, %v442
        %v444 = vpop.f32.mrb[0].mxu0
        %v445 = vadd.f32 0.0, %v444
        %446 = vmatprep.mubr.f32.mxu0 0.0
        %447 = vmatmul.mubr.f32.gmra.mrb[0].mxu0 %v350
        %v448 = vpop.f32.mrb[0].mxu0
        %v449 = vadd.f32 0.0, %v448
        %v450 = vpop.f32.mrb[0].mxu0
        %v451 = vadd.f32 0.0, %v450
        %452 = vdwg.mxu0
        %v453 = vlaneseq
        %v454 = vand.u32 %v453, 127
        %v455 = vadd.s32 %v454, 128
        %vm456 = vcmp.lt.s32.totalorder %v454, 0
        %v457 = vsub.s32 0, %v454
        %v458 = vsel %vm456, %v457, %v454
        %v459 = vshrl.u32 %v458, 4
        %v460 = vand.u32 %v458, 15
        %v461 = vsub.s32 0, %v460
        %v462 = vsel %vm456, %v461, %v460
        %vm463 = vcmp.lt.s32.totalorder %v455, 0
        %v464 = vsub.s32 0, %v455
        %v465 = vsel %vm463, %v464, %v455
        %v466 = vshrl.u32 %v465, 4
        %v467 = vand.u32 %v465, 15
        %v468 = vsub.s32 0, %v467
        %v469 = vsel %vm463, %v468, %v467
        %vm470 = vcmp.ne.s32.totalorder %v462, 0
        %vm471 = vcmp.ne.s32.totalorder %v469, 0
        %vm472 = vcmp.lt.s32.totalorder %v462, 0
        %vm473 = vcmp.lt.s32.totalorder %v469, 0
        %vm474 = vmand %vm472, %vm470
        %vm475 = vmand %vm473, %vm471
        %v476 = vadd.s32 %v462, 16
        %v477 = vadd.s32 %v469, 16
        %v478 = vsel %vm474, %v476, %v462
        %v479 = vsel %vm475, %v477, %v469
        %vm480 = vcmp.ge.s32.totalorder %v454, 16
        %vm481 = vcmp.ge.s32.totalorder %v455, 16
        %v482 = vsel %vm480, 1, 0
        %v483 = vsel %vm481, 1, 0
        %v484 = vcvt.s32.f32 %v482
        %v485 = vcvt.s32.f32 %v483
        %vm486 = vcmp.lt.s32.totalorder %v454, 240
        %vm487 = vcmp.lt.s32.totalorder %v455, 240
        %v488 = vsel %vm486, 1, 0
        %v489 = vsel %vm487, 1, 0
        %v490 = vcvt.s32.f32 %v488
        %v491 = vcvt.s32.f32 %v489
        %vm492 = vcmp.ge.s32.totalorder %v478, 1
        %vm493 = vcmp.ge.s32.totalorder %v479, 1
        %v494 = vsel %vm492, 1, 0
        %v495 = vsel %vm493, 1, 0
        %v496 = vcvt.s32.f32 %v494
        %v497 = vcvt.s32.f32 %v495
        %vm498 = vcmp.lt.s32.totalorder %v478, 15
        %vm499 = vcmp.lt.s32.totalorder %v479, 15
        %v500 = vsel %vm498, 1, 0
        %v501 = vsel %vm499, 1, 0
        %v502 = vcvt.s32.f32 %v500
        %v503 = vcvt.s32.f32 %v501
        %504 = vrot.lane.b32.xlu0 %v425, 17
        %v505 = vpop.permute.xlu0 %504
        %506 = vrot.lane.b32.xlu0 %v427, 17
        %v507 = vpop.permute.xlu0 %506
        %vm508 = vcmp.lt.s32.totalorder %v454, 17
        %v509 = vsel %vm508, %v505, %v507
        %v510 = vsel %vm508, %v507, %v505
        %v511 = vmul.f32 %v484, %v496
        %v512 = vmul.f32 %v485, %v497
        %v513 = vmul.f32 %v510, %v511
        %v514 = vmul.f32 %v509, %v512
        %v517 = vrot.slane %v425, 4
        %v518 = vrot.slane %v427, 4
        %521 = vrot.lane.b32.xlu0 %v517, 16
        %v522 = vpop.permute.xlu0 %521
        %523 = vrot.lane.b32.xlu0 %v518, 16
        %v524 = vpop.permute.xlu0 %523
        %vm525 = vcmp.lt.s32.totalorder %v454, 16
        %v526 = vsel %vm525, %v522, %v524
        %v527 = vsel %vm525, %v524, %v522
        %v528 = vmul.f32 %v527, %v484
        %v529 = vmul.f32 %v526, %v485
        %v530 = vadd.f32 %v513, %v528
        %v531 = vadd.f32 %v514, %v529
        %532 = vrot.lane.b32.xlu0 %v431, 15
        %v533 = vpop.permute.xlu0 %532
        %534 = vrot.lane.b32.xlu0 %v433, 15
        %v535 = vpop.permute.xlu0 %534
        %vm536 = vcmp.lt.s32.totalorder %v454, 15
        %v537 = vsel %vm536, %v533, %v535
        %v538 = vsel %vm536, %v535, %v533
        %v539 = vmul.f32 %v484, %v502
        %v540 = vmul.f32 %v485, %v503
        %v541 = vmul.f32 %v538, %v539
        %v542 = vmul.f32 %v537, %v540
        %v543 = vadd.f32 %v530, %v541
        %v544 = vadd.f32 %v531, %v542
        %v547 = vrot.slane %v431, 4
        %v548 = vrot.slane %v433, 4
        %551 = vrot.lane.b32.xlu0 %v547, 1
        %v552 = vpop.permute.xlu0 %551
        %553 = vrot.lane.b32.xlu0 %v548, 1
        %v554 = vpop.permute.xlu0 %553
        %vm555 = vcmp.lt.s32.totalorder %v454, 1
        %v556 = vsel %vm555, %v552, %v554
        %v557 = vsel %vm555, %v554, %v552
        %v558 = vmul.f32 %v557, %v496
        %v559 = vmul.f32 %v556, %v497
        %v560 = vadd.f32 %v543, %v558
        %v561 = vadd.f32 %v544, %v559
        %v562 = vadd.f32 %v560, %v437
        %v563 = vadd.f32 %v561, %v439
        %v566 = vrot.slane %v437, 4
        %v567 = vrot.slane %v439, 4
        %570 = vrot.lane.b32.xlu0 %v566, 127
        %v571 = vpop.permute.xlu0 %570
        %572 = vrot.lane.b32.xlu0 %v567, 127
        %v573 = vpop.permute.xlu0 %572
        %vm574 = vcmp.lt.s32.totalorder %v454, 127
        %v575 = vsel %vm574, %v571, %v573
        %v576 = vsel %vm574, %v573, %v571
        %v577 = vmul.f32 %v575, %v502
        %v578 = vmul.f32 %v576, %v503
        %v579 = vadd.f32 %v562, %v577
        %v580 = vadd.f32 %v563, %v578
        %581 = vrot.lane.b32.xlu0 %v443, 113
        %v582 = vpop.permute.xlu0 %581
        %583 = vrot.lane.b32.xlu0 %v445, 113
        %v584 = vpop.permute.xlu0 %583
        %vm585 = vcmp.lt.s32.totalorder %v454, 113
        %v586 = vsel %vm585, %v582, %v584
        %v587 = vsel %vm585, %v584, %v582
        %v588 = vmul.f32 %v490, %v496
        %v589 = vmul.f32 %v491, %v497
        %v590 = vmul.f32 %v586, %v588
        %v591 = vmul.f32 %v587, %v589
        %v592 = vadd.f32 %v579, %v590
        %v593 = vadd.f32 %v580, %v591
        %v596 = vrot.slane %v443, 4
        %v597 = vrot.slane %v445, 4
        %600 = vrot.lane.b32.xlu0 %v596, 112
        %v601 = vpop.permute.xlu0 %600
        %602 = vrot.lane.b32.xlu0 %v597, 112
        %v603 = vpop.permute.xlu0 %602
        %vm604 = vcmp.lt.s32.totalorder %v454, 112
        %v605 = vsel %vm604, %v601, %v603
        %v606 = vsel %vm604, %v603, %v601
        %v607 = vmul.f32 %v605, %v490
        %v608 = vmul.f32 %v606, %v491
        %v609 = vadd.f32 %v592, %v607
        %v610 = vadd.f32 %v593, %v608
        %611 = vrot.lane.b32.xlu0 %v449, 111
        %v612 = vpop.permute.xlu0 %611
        %613 = vrot.lane.b32.xlu0 %v451, 111
        %v614 = vpop.permute.xlu0 %613
        %vm615 = vcmp.lt.s32.totalorder %v454, 111
        %v616 = vsel %vm615, %v612, %v614
        %v617 = vsel %vm615, %v614, %v612
        %v618 = vmul.f32 %v490, %v502
        %v619 = vmul.f32 %v491, %v503
        %v620 = vmul.f32 %v616, %v618
        %v621 = vmul.f32 %v617, %v619
        %v622 = vadd.f32 %v609, %v620
        %v623 = vadd.f32 %v610, %v621
        %v624 = vsel %vm231, %v622, 0.0
        %v625 = vsel %vm231, %v623, 0.0
        %v626 = vadd.f32 %v624, %v625
        %627 = vadd.xlane.f32.xlu0 %v626
        %v628 = vpop.xlane.xlu0 %627
        %v629 = vmul.f32 %v628, 0.00390625
        %v630 = vsub.f32 %v622, %v629
        %v631 = vsub.f32 %v623, %v629
        %v632 = vmul.f32 %v630, %v630
        %v633 = vmul.f32 %v631, %v631
        %v634 = vsel %vm231, %v632, 0.0
        %v635 = vsel %vm231, %v633, 0.0
        %v636 = vadd.f32 %v634, %v635
        %637 = vadd.xlane.f32.xlu0 %v636
        %v638 = vpop.xlane.xlu0 %637
        %v639 = vmul.f32 %v638, 0.00390625
        %v640 = vadd.f32 %v639, 1e-05
        %v641 = vrsqrt.pop %v640
        %v642 = vmul.f32 %v630, %v641
        %v643 = vmul.f32 %v631, %v641
        %v644 = vld [vmem:[%s215] sm:$0xff]
        %v646 = vcombine.high %v644, %v644
        %v648 = vadd.f32 %v642, %v644
        %v649 = vadd.f32 %v643, %v646
        %v652 = vcombine.low %v648, %v649
        %654 = vst [vmem:[%s205] sm:$0xff] %v652
        %s655 = sand.u32 %s120, 1
        %s656 = scalar_lea.sflag [#allocation3], %s655
        %s657 = sand.u32 %s120, 1
        %s658 = smul.addr %s657, 8
        %s659 = scalar_lea.vmem [#allocation2], %s658
        // Predicated region
        $region37: #{tpu_custom_call.1} parent=35 // pred_check
          %p660 = pneg %p130
        $region38: #{tpu_custom_call.1} parent=35 // pred_check_branch
          %662 = sbr.rel (%p660) target = $region40
        $region39: #{tpu_custom_call.1} parent=35 // pred_region
          %s664 = ssub.s32 128, 128
          %665 = vsyncadd %s656, %s664
          %s666 = smul.addr %s18, 2
          %s667 = smul.addr %s666, 64
          %s668 = scalar_lea.hbm %s4, %s667
          %s670 = sshll.u32 %s659, 4
          %s671 = int_to_ptr.vmem [resolvable:$true] %s670
          %673 = dma.vmem_to_hbm [thread:$0]  %s671, 128, %s668, %s656
        $region40: #{tpu_custom_call.1} parent=35 // pred_fallthru
          _
      $region36: #{tpu_custom_call.1} parent=5 // pred_fallthru
        _
      %p674 = scmp.le.s32.totalorder 2, %s13
      // Predicated region
      $region41: #{tpu_custom_call.1} parent=5 // pred_check
        %p675 = pneg %p674
      $region42: #{tpu_custom_call.1} parent=5 // pred_check_branch
        %677 = sbr.rel (%p675) target = $region44
      $region43: #{tpu_custom_call.1} parent=5 // pred_region
        %s678 = ssub.s32 %s13, 2
        // Predicated region
        $region45: #{tpu_custom_call.1} parent=43 // pred_check
          %p679 = pneg %p136
        $region46: #{tpu_custom_call.1} parent=43 // pred_check_branch
          %681 = sbr.rel (%p679) target = $region48
        $region47: #{tpu_custom_call.1} parent=43 // pred_region
          %s682 = sand.u32 %s121, 1
          %s683 = scalar_lea.sflag [#allocation3], %s682
          %s684 = sand.u32 %s121, 1
          %s685 = smul.addr %s684, 8
          %s686 = scalar_lea.vmem [#allocation2], %s685
          %687 = dma.done %s683, 128
        $region48: #{tpu_custom_call.1} parent=43 // pred_fallthru
          _
      $region44: #{tpu_custom_call.1} parent=5 // pred_fallthru
        _
    $region6: #{tpu_custom_call.1} parent=1 // loop_footer
      %s17 = sadd.s32 1, %s13
    $region7: #{tpu_custom_call.1} parent=1 // loop_footer_branch
      %12 = sbr.rel target = $region3
    $region8: #{tpu_custom_call.1} parent=1 // loop_exit
      _
    %688 = vsyncpa [#allocation3], 1
    %s689 = scalar_lea.sflag [#allocation3], 1
    %690 = vsyncpa %s689, 1

</llo_original>
